<compile_context>
chip_gen: v5e
topology: v5e:2x2
jax: 0.10.0
libtpu: 0.0.40
codegen_flags: <defaults>
</compile_context>

<pallas_src>
import functools
import math

import jax
import jax.numpy as jnp
from jax import lax
from jax.experimental import pallas as pl
from jax.experimental.pallas import tpu as pltpu

KERNEL_SIZE = 3
DILATION = 3
RECEPTIVE = DILATION * (KERNEL_SIZE - 1)   # 6 trailing output rows are zero-padded
HALO = 16                                  # receptive field rounded up to the bf16 sublane packing

_MAX_TILE_L = 4096            # cap on L rows per grid step (budget usually binds first)
_MAX_BATCH_BLOCK = 8          # unroll bound for the in-kernel batch loop
_TARGET_ROWS_PER_STEP = 2048  # amortization target for the fixed per-step overhead


def _round_up(x, m):
    return ((x + m - 1) // m) * m


def _vmem_tile_bytes(rows, cols, itemsize):
    """(8,128)-tiled VMEM footprint of a 2-D block (narrow last dims are lane-padded)."""
    return _round_up(max(rows, 1), 8) * _round_up(max(cols, 1), 128) * itemsize


def _vmem_limits():
    """Generation-aware scoped-VMEM request + block budget.

    v5e/v6e have 128 MiB physical VMEM -> request 64 MiB scoped; v7x has
    64 MiB -> request 32 MiB.  Blocks are sized against 3/4 of the request so
    the compiler keeps headroom for its own temporaries.
    """
    try:
        cap = int(pltpu.get_tpu_info().vmem_capacity_bytes)
    except Exception:                       # interpret mode / older runtimes
        cap = 64 * 1024 * 1024              # conservative (v7x-sized) fallback
    limit = min(cap // 2, 64 * 1024 * 1024)
    budget = (limit * 3) // 4
    return limit, budget


def _step_vmem_bytes(bb, tl, c_in, c_out, in_bytes, out_bytes):
    """VMEM used by one grid step: double-buffered pipeline blocks + resident
    weights/bias + the z scratch + the live f32 accumulator."""
    x_blk = bb * _vmem_tile_bytes(tl, c_in, in_bytes)
    h_blk = bb * _vmem_tile_bytes(HALO, c_in, in_bytes)
    o_blk = bb * _vmem_tile_bytes(tl, c_out, out_bytes)
    w_blk = _vmem_tile_bytes(c_in, KERNEL_SIZE * c_out, in_bytes)
    b_blk = _vmem_tile_bytes(1, c_out, 4)
    z_scr = _vmem_tile_bytes(tl + HALO, KERNEL_SIZE * c_out, 4)
    acc = _vmem_tile_bytes(tl, c_out, 4)
    return 2 * (x_blk + h_blk + o_blk + w_blk + b_blk) + z_scr + acc


def _pick_tile_l(L, c_in, c_out, in_bytes, out_bytes, budget):
    """Largest multiple-of-16 L tile (whole padded row if it fits, cap 4096)."""
    tl = min(_round_up(L, HALO), _MAX_TILE_L)
    while tl > HALO and _step_vmem_bytes(1, tl, c_in, c_out, in_bytes, out_bytes) > budget:
        tl = max(HALO, (tl // 2 // HALO) * HALO)
    return tl


def _pick_batch_block(B, tile_l, c_in, c_out, in_bytes, out_bytes, budget):
    """Fold several batch rows per step when a whole row is still tiny.

    Keeps at least 2 batch blocks when B > 1 so megacore can split the grid.
    """
    bb = max(1, -(-_TARGET_ROWS_PER_STEP // tile_l))     # ceil division
    bb = min(bb, _MAX_BATCH_BLOCK, max(1, B // 2), B)
    while bb > 1 and _step_vmem_bytes(bb, tile_l, c_in, c_out, in_bytes, out_bytes) > budget:
        bb -= 1
    return max(1, bb)


def _mcb_kernel(x_ref, halo_ref, w_ref, b_ref, o_ref, z_ref, *, l_out):
    """One (batch-block, L-tile) grid step: dilated conv + bias + ReLU + right zero-pad."""
    bb, tile_l, _ = x_ref.shape
    c_out = o_ref.shape[2]
    j = pl.program_id(1)
    first_tail_tile = l_out // tile_l

    def store(b, acc):
        # Tiles strictly left of the zero-pad region store their slab directly;
        # only tiles containing rows >= L-6 take the masked path.  where()
        # (a select, not a multiply) keeps NaN/Inf garbage from clamped halos /
        # partial boundary blocks out of the kept rows.
        @pl.when(j < first_tail_tile)
        def _():
            o_ref[b] = acc.astype(o_ref.dtype)

        @pl.when(j >= first_tail_tile)
        def _():
            rows = j * tile_l + lax.broadcasted_iota(jnp.int32, acc.shape, 0)
            o_ref[b] = jnp.where(rows < l_out, acc, 0.0).astype(o_ref.dtype)

    for b in range(bb):                       # static unroll over this block's batch rows
        # All 3 dilated taps for the main tile and its 16-row halo, via two MXU
        # matmuls written straight into the z scratch (no xw concatenate copy):
        #   z[t, k*C_out + o] = sum_c x[t, c] * W[o, c, k]
        z_ref[0:tile_l, :] = jnp.dot(x_ref[b], w_ref[...],
                                     preferred_element_type=jnp.float32)
        z_ref[tile_l:tile_l + HALO, :] = jnp.dot(halo_ref[b], w_ref[...],
                                                 preferred_element_type=jnp.float32)
        z = z_ref[...]

        # Tap alignment: y[t] = z[t, tap0] + z[t+3, tap1] + z[t+6, tap2].
        # The static 3/6-row offsets lower to sublane rotates on the XLU,
        # which is otherwise idle in this kernel.
        acc = z[0:tile_l, 0:c_out]
        for k in range(1, KERNEL_SIZE):
            acc = acc + z[k * DILATION:k * DILATION + tile_l,
                          k * c_out:(k + 1) * c_out]

        # Bias + ReLU in f32 (v5e's VPU has no bf16 path; accumulator is f32).
        store(b, jnp.maximum(acc + b_ref[...], 0.0))


def multichannel_block(x, weight, bias, *, tile_l=None, batch_block=None,
                       compute_dtype=None):
    """Forward pass of MultichannelBlock.

    x: (B, L, C_in); weight: (C_out, C_in, 3) (PyTorch Conv1d layout);
    bias: (C_out,).  Returns (B, L, C_out) with rows L-6..L-1 zeroed.

    compute_dtype: pass jnp.bfloat16 on v6e/v7x to halve HBM/VMEM traffic
    (ideally feed bf16 from the producer so the wrapper cast is free); the MXU
    accumulation and bias/ReLU remain f32.
    """
    B, L, C_in = x.shape
    C_out = weight.shape[0]
    assert L > RECEPTIVE, "sequence length must exceed the conv receptive field"
    L_out = L - RECEPTIVE

    cdt = jnp.dtype(compute_dtype) if compute_dtype is not None else x.dtype
    out_dtype = x.dtype
    in_bytes = jnp.dtype(cdt).itemsize
    out_bytes = jnp.dtype(out_dtype).itemsize

    vmem_limit, budget = _vmem_limits()
    if tile_l is None:
        tile_l = _pick_tile_l(L, C_in, C_out, in_bytes, out_bytes, budget)
    assert tile_l % HALO == 0 and tile_l >= HALO, "tile_l must be a multiple of 16"
    if batch_block is None:
        batch_block = _pick_batch_block(B, tile_l, C_in, C_out, in_bytes, out_bytes, budget)
    bb = max(1, min(batch_block, B, _MAX_BATCH_BLOCK))

    num_bblocks = pl.cdiv(B, bb)
    num_tiles = pl.cdiv(L, tile_l)
    halo_stride = tile_l // HALO             # L-tile size measured in 16-row halo blocks
    hmax = pl.cdiv(L, HALO) - 1              # last in-bounds halo block index

    # Repack the Conv1d weight so the 3 taps sit side by side along the output
    # dim: w_all[c, k*C_out + o] = weight[o, c, k]  -> shape (C_in, 3*C_out).
    w_all = jnp.transpose(weight, (1, 2, 0)).reshape(C_in, KERNEL_SIZE * C_out).astype(cdt)
    b2 = bias.reshape(1, C_out).astype(jnp.float32)   # bias stays f32 (v5e-safe)
    xc = x.astype(cdt)                                # no-op when compute_dtype is None

    kernel = functools.partial(_mcb_kernel, l_out=L_out)

    return pl.pallas_call(
        kernel,
        out_shape=jax.ShapeDtypeStruct((B, L, C_out), out_dtype),
        grid=(num_bblocks, num_tiles),
        in_specs=[
            # Current (batch-block, L-tile) of x (auto double-buffered / pipelined).
            pl.BlockSpec((bb, tile_l, C_in), lambda i, j: (i, j, 0)),
            # 16-row halo: the first rows of the *next* L tile of the same array
            # (index clamped at the sequence end; clamped / partial halo rows only
            # ever feed output rows that are masked to zero).
            pl.BlockSpec((bb, HALO, C_in),
                         lambda i, j: (i, jnp.minimum((j + 1) * halo_stride, hmax), 0)),
            # Fused weights / bias: constant index_map -> fetched once, resident.
            pl.BlockSpec((C_in, KERNEL_SIZE * C_out), lambda i, j: (0, 0)),
            pl.BlockSpec((1, C_out), lambda i, j: (0, 0)),
        ],
        out_specs=pl.BlockSpec((bb, tile_l, C_out), lambda i, j: (i, j, 0)),
        scratch_shapes=[pltpu.VMEM((tile_l + HALO, KERNEL_SIZE * C_out), jnp.float32)],
        compiler_params=pltpu.CompilerParams(
            # Both axes independent -> v7x megacore shards them (batch blocks first,
            # kept even by the picker); harmless on v5e/v6e.
            dimension_semantics=("parallel", "parallel"),
            vmem_limit_bytes=vmem_limit,
        ),
    )(xc, xc, w_all, b2)


def _reference(x, weight, bias):
    """Pure-JAX reference matching the PyTorch forward semantics."""
    B, L, C_in = x.shape
    C_out = weight.shape[0]
    L_out = L - RECEPTIVE
    y = jnp.zeros((B, L_out, C_out), jnp.float32)
    for k in range(KERNEL_SIZE):
        xs = x[:, k * DILATION:k * DILATION + L_out, :]          # (B, L_out, C_in)
        y = y + jnp.einsum("blc,oc->blo", xs, weight[:, :, k])
    y = jnp.maximum(y + bias[None, None, :], 0.0)
    return jnp.concatenate([y, jnp.zeros((B, RECEPTIVE, C_out), y.dtype)], axis=1)


if __name__ == "__main__":
    key = jax.random.PRNGKey(0)
    kx1, kx2, kx3, kw, kb = jax.random.split(key, 5)

    C_in, C_out = 4, 8

    # Deterministic Conv1d parameter init (PyTorch-default bound = 1/sqrt(fan_in)).
    fan_in = C_in * KERNEL_SIZE
    bound = 1.0 / math.sqrt(fan_in)
    weight = jax.random.uniform(kw, (C_out, C_in, KERNEL_SIZE),
                                minval=-bound, maxval=bound, dtype=jnp.float32)
    bias = jax.random.uniform(kb, (C_out,), minval=-bound, maxval=bound,
                              dtype=jnp.float32)

    # Case 1: module-sized input (B=2, L=16, C_in=4) -> whole-row block per step.
    x1 = jax.random.normal(kx1, (2, 16, C_in), dtype=jnp.float32)
    out1 = jax.block_until_ready(multichannel_block(x1, weight, bias))
    ref1 = _reference(x1, weight, bias)
    assert out1.shape == (2, 16, C_out)
    assert jnp.allclose(out1, ref1, atol=3e-5, rtol=3e-5), "case 1 mismatch vs reference"

    # Case 2: longer sequence with an explicit 16-row tile -> exercises the
    # multi-tile pipeline, the cross-tile halo and the tail-masking path.
    x2 = jax.random.normal(kx2, (2, 64, C_in), dtype=jnp.float32)
    out2 = jax.block_until_ready(multichannel_block(x2, weight, bias, tile_l=16))
    ref2 = _reference(x2, weight, bias)
    assert out2.shape == (2, 64, C_out)
    assert jnp.allclose(out2, ref2, atol=3e-5, rtol=3e-5), "case 2 mismatch vs reference"

    # Case 3: L not a multiple of the tile or of 8, plus batch blocking with a
    # partial final batch block -> exercises every boundary-masking path
    # (partial L tiles, partial/clamped halos, dropped out-of-bounds writes).
    x3 = jax.random.normal(kx3, (3, 50, C_in), dtype=jnp.float32)
    out3 = jax.block_until_ready(
        multichannel_block(x3, weight, bias, tile_l=16, batch_block=2))
    ref3 = _reference(x3, weight, bias)
    assert out3.shape == (3, 50, C_out)
    assert jnp.allclose(out3, ref3, atol=3e-5, rtol=3e-5), "case 3 mismatch vs reference"

    # Case 4: bf16 compute path (recommended on v6e/v7x); looser tolerance.
    out4 = jax.block_until_ready(
        multichannel_block(x2, weight, bias, compute_dtype=jnp.bfloat16))
    assert jnp.allclose(out4, ref2, atol=5e-2, rtol=5e-2), "case 4 mismatch vs reference"

    print("KERNEL_OK")
</pallas_src>

<mosaic_0001>
module attributes {stable_mosaic.version = 11 : i64} {
  func.func @_mcb_kernel(%arg0: i32, %arg1: i32, %arg2: memref<1x16x4xf32, #tpu.memory_space<vmem>>, %arg3: memref<1x16x4xf32, #tpu.memory_space<vmem>>, %arg4: memref<4x24xf32, #tpu.memory_space<vmem>>, %arg5: memref<1x8xf32, #tpu.memory_space<vmem>>, %arg6: memref<1x16x8xf32, #tpu.memory_space<vmem>>, %arg7: memref<32x24xf32, #tpu.memory_space<vmem>>) attributes {dimension_semantics = [#tpu.dimension_semantics<parallel>, #tpu.dimension_semantics<parallel>], iteration_bounds = array<i64: 2, 1>, scalar_prefetch = 0 : i64, scratch_operands = 1 : i64, tpu.core_type = #tpu.core_type<tc>, window_params = [{transform_indices = @transform_0, window_bounds = array<i64: 1, 16, 4>}, {transform_indices = @transform_1, window_bounds = array<i64: 1, 16, 4>}, {pipeline_mode = #tpu.pipeline_mode<synchronous>, transform_indices = @transform_2, window_bounds = array<i64: 4, 24>}, {pipeline_mode = #tpu.pipeline_mode<synchronous>, transform_indices = @transform_3, window_bounds = array<i64: 1, 8>}, {transform_indices = @transform_4, window_bounds = array<i64: 1, 16, 8>}]} {
    %c0 = arith.constant 0 : index
    %c0_0 = arith.constant 0 : index
    %c0_1 = arith.constant 0 : index
    %0 = vector.load %arg2[%c0, %c0_0, %c0_1] : memref<1x16x4xf32, #tpu.memory_space<vmem>>, vector<1x16x4xf32>
    %1 = vector.shape_cast %0 : vector<1x16x4xf32> to vector<16x4xf32>
    %c0_2 = arith.constant 0 : index
    %c0_3 = arith.constant 0 : index
    %2 = vector.load %arg4[%c0_2, %c0_3] : memref<4x24xf32, #tpu.memory_space<vmem>>, vector<4x24xf32>
    %cst = arith.constant dense<0.000000e+00> : vector<16x24xf32>
    %3 = tpu.matmul %1, %2, %cst {dimension_numbers = #tpu.dot_dimension_numbers<[1], [0], [0], [1], [0, 0, 1, 1], [], []>} : vector<16x4xf32>, vector<4x24xf32>, vector<16x24xf32> -> vector<16x24xf32>
    %c0_4 = arith.constant 0 : index
    %c0_5 = arith.constant 0 : index
    %4 = vector.load %arg7[%c0_4, %c0_5] : memref<32x24xf32, #tpu.memory_space<vmem>>, vector<16x24xf32>
    tpu.vector_store %arg7[%c0_4, %c0_5], %3 {strides = array<i32>} : memref<32x24xf32, #tpu.memory_space<vmem>>, vector<16x24xf32>,
    %c0_6 = arith.constant 0 : index
    %c0_7 = arith.constant 0 : index
    %c0_8 = arith.constant 0 : index
    %5 = vector.load %arg3[%c0_6, %c0_7, %c0_8] : memref<1x16x4xf32, #tpu.memory_space<vmem>>, vector<1x16x4xf32>
    %6 = vector.shape_cast %5 : vector<1x16x4xf32> to vector<16x4xf32>
    %c0_9 = arith.constant 0 : index
    %c0_10 = arith.constant 0 : index
    %7 = vector.load %arg4[%c0_9, %c0_10] : memref<4x24xf32, #tpu.memory_space<vmem>>, vector<4x24xf32>
    %cst_11 = arith.constant dense<0.000000e+00> : vector<16x24xf32>
    %8 = tpu.matmul %6, %7, %cst_11 {dimension_numbers = #tpu.dot_dimension_numbers<[1], [0], [0], [1], [0, 0, 1, 1], [], []>} : vector<16x4xf32>, vector<4x24xf32>, vector<16x24xf32> -> vector<16x24xf32>
    %c16 = arith.constant 16 : index
    %c0_12 = arith.constant 0 : index
    %9 = vector.load %arg7[%c16, %c0_12] : memref<32x24xf32, #tpu.memory_space<vmem>>, vector<16x24xf32>
    tpu.vector_store %arg7[%c16, %c0_12], %8 {strides = array<i32>} : memref<32x24xf32, #tpu.memory_space<vmem>>, vector<16x24xf32>,
    %c0_13 = arith.constant 0 : index
    %c0_14 = arith.constant 0 : index
    %10 = vector.load %arg7[%c0_13, %c0_14] : memref<32x24xf32, #tpu.memory_space<vmem>>, vector<32x24xf32>
    %11 = vector.extract_strided_slice %10 {offsets = [0, 0], sizes = [16, 8], strides = [1, 1]} : vector<32x24xf32> to vector<16x8xf32>
    %12 = vector.extract_strided_slice %10 {offsets = [3, 8], sizes = [16, 8], strides = [1, 1]} : vector<32x24xf32> to vector<16x8xf32>
    %13 = arith.addf %11, %12 : vector<16x8xf32>
    %14 = vector.extract_strided_slice %10 {offsets = [6, 16], sizes = [16, 8], strides = [1, 1]} : vector<32x24xf32> to vector<16x8xf32>
    %15 = arith.addf %13, %14 : vector<16x8xf32>
    %c0_15 = arith.constant 0 : index
    %c0_16 = arith.constant 0 : index
    %16 = vector.load %arg5[%c0_15, %c0_16] : memref<1x8xf32, #tpu.memory_space<vmem>>, vector<1x8xf32>
    %17 = vector.broadcast %16 : vector<1x8xf32> to vector<16x8xf32>
    %18 = arith.addf %15, %17 : vector<16x8xf32>
    %cst_17 = arith.constant 0.000000e+00 : f32
    %19 = vector.broadcast %cst_17 : f32 to vector<16x8xf32>
    %20 = arith.maximumf %18, %19 : vector<16x8xf32>
    %c0_i32 = arith.constant 0 : i32
    %21 = arith.cmpi slt, %arg1, %c0_i32 : i32
    %22 = arith.extui %21 : i1 to i32
    %c0_i32_18 = arith.constant 0 : i32
    %23 = arith.cmpi ne, %22, %c0_i32_18 : i32
    scf.if %23 {
      %c0_21 = arith.constant 0 : index
      %c0_22 = arith.constant 0 : index
      %c0_23 = arith.constant 0 : index
      %27 = vector.load %arg6[%c0_21, %c0_22, %c0_23] : memref<1x16x8xf32, #tpu.memory_space<vmem>>, vector<1x16x8xf32>
      %28 = vector.shape_cast %27 : vector<1x16x8xf32> to vector<16x8xf32>
      %29 = vector.shape_cast %20 : vector<16x8xf32> to vector<1x16x8xf32>
      tpu.vector_store %arg6[%c0_21, %c0_22, %c0_23], %29 {strides = array<i32>} : memref<1x16x8xf32, #tpu.memory_space<vmem>>, vector<1x16x8xf32>,
    } else {
    }
    %c0_i32_19 = arith.constant 0 : i32
    %24 = arith.cmpi sge, %arg1, %c0_i32_19 : i32
    %25 = arith.extui %24 : i1 to i32
    %c0_i32_20 = arith.constant 0 : i32
    %26 = arith.cmpi ne, %25, %c0_i32_20 : i32
    scf.if %26 {
      %c16_i32 = arith.constant 16 : i32
      %27 = arith.muli %arg1, %c16_i32 : i32
      %28 = tpu.iota {dimensions = array<i32: 0>} : vector<16x8xi32>
      %29 = vector.broadcast %27 : i32 to vector<16x8xi32>
      %30 = arith.addi %29, %28 : vector<16x8xi32>
      %c10_i32 = arith.constant 10 : i32
      %31 = vector.broadcast %c10_i32 : i32 to vector<16x8xi32>
      %32 = arith.cmpi slt, %30, %31 : vector<16x8xi32>
      %cst_21 = arith.constant 0.000000e+00 : f32
      %33 = vector.broadcast %cst_21 : f32 to vector<16x8xf32>
      %34 = arith.select %32, %20, %33 : vector<16x8xi1>, vector<16x8xf32>
      %c0_22 = arith.constant 0 : index
      %c0_23 = arith.constant 0 : index
      %c0_24 = arith.constant 0 : index
      %35 = vector.load %arg6[%c0_22, %c0_23, %c0_24] : memref<1x16x8xf32, #tpu.memory_space<vmem>>, vector<1x16x8xf32>
      %36 = vector.shape_cast %35 : vector<1x16x8xf32> to vector<16x8xf32>
      %37 = vector.shape_cast %34 : vector<16x8xf32> to vector<1x16x8xf32>
      tpu.vector_store %arg6[%c0_22, %c0_23, %c0_24], %37 {strides = array<i32>} : memref<1x16x8xf32, #tpu.memory_space<vmem>>, vector<1x16x8xf32>,
    } else {
    }
    return
  }
  func.func @transform_0(%arg0: i32, %arg1: i32) -> (i32, i32, i32) {
    %c0_i32 = arith.constant 0 : i32
    %c0_i32_0 = arith.constant 0 : i32
    return %arg0, %arg1, %c0_i32 : i32, i32, i32
  }
  func.func @transform_1(%arg0: i32, %arg1: i32) -> (i32, i32, i32) {
    %c1_i32 = arith.constant 1 : i32
    %0 = arith.addi %arg1, %c1_i32 : i32
    %c1_i32_0 = arith.constant 1 : i32
    %1 = arith.muli %0, %c1_i32_0 : i32
    %c0_i32 = arith.constant 0 : i32
    %2 = arith.minsi %1, %c0_i32 : i32
    %c0_i32_1 = arith.constant 0 : i32
    %c0_i32_2 = arith.constant 0 : i32
    return %arg0, %2, %c0_i32_1 : i32, i32, i32
  }
  func.func @transform_2(%arg0: i32, %arg1: i32) -> (i32, i32) {
    %c0_i32 = arith.constant 0 : i32
    %c0_i32_0 = arith.constant 0 : i32
    %c0_i32_1 = arith.constant 0 : i32
    return %c0_i32, %c0_i32_0 : i32, i32
  }
  func.func @transform_3(%arg0: i32, %arg1: i32) -> (i32, i32) {
    %c0_i32 = arith.constant 0 : i32
    %c0_i32_0 = arith.constant 0 : i32
    %c0_i32_1 = arith.constant 0 : i32
    return %c0_i32, %c0_i32_0 : i32, i32
  }
  func.func @transform_4(%arg0: i32, %arg1: i32) -> (i32, i32, i32) {
    %c0_i32 = arith.constant 0 : i32
    %c0_i32_0 = arith.constant 0 : i32
    return %arg0, %arg1, %c0_i32 : i32, i32, i32
  }
}

</mosaic_0001>

<llo_original>
// kernel: tpu_custom_call.1
$region0: #{tpu_custom_call.1}
  #allocation0 [shape = 'u32[]', space=smem, size = 0x4, offset = 0x4, fixed_abs, tag = 'smem constant byte address 0x4 - core index']
  #allocation1 [shape = 'u32[72,128]{1,0:T(1,128)}', space=vmem, size = 0x9000, scoped, tag = 'internal scratch']
  #allocation2 [shape = 'f32[32,24]{1,0:T(8,128)}', space=vmem, size = 0x4000, scoped, tag = 'scratch operand']
  %s0 = inlined_call_operand.vmem [shape: f32[2,16,4], index: 0, kind: input, shape index: {}]
  %s1 = inlined_call_operand.vmem [shape: f32[2,16,4], index: 1, kind: input, shape index: {}]
  %s2 = inlined_call_operand.vmem [shape: f32[4,24], index: 2, kind: input, shape index: {}]
  %s3 = inlined_call_operand.vmem [shape: f32[1,8], index: 3, kind: input, shape index: {}]
  %s4 = inlined_call_operand.vmem [shape: f32[2,16,8], index: 4, kind: output, shape index: {}]
  %s5 = sld [smem:[#allocation0]]
  $region57: #{tpu_custom_call.1} parent=0
    _
  %s7 = ssub.s32 1, %s5
  %s8 = scalar_select 0, %s7, %s5
  loop: start=0, step=1, limit=4
  $region2: #{tpu_custom_call.1} parent=0 // loop_pre_header
    _
  $region3: #{tpu_custom_call.1} parent=0 // loop_header
    %s10 = sphi 0, %s14
    %p11 = scmp.ge.s32.totalorder %s10, 4
    %s17 = sphi 0, %s29
    %s18 = sphi 0, %s25
    %s19 = sphi 0, %s17
    %s20 = sphi 0, %s18
    %s21 = sphi 0, %s19
    %s22 = sphi 0, %s20
    %s34 = sphi 0, %s36
    %s37 = sphi 0, %s34
    %s38 = sphi 0, %s37
    %s54 = sphi 0, %s38
    %s68 = sphi 0, %s70
    %s71 = sphi 0, %s68
    %s72 = sphi 0, %s71
    %s88 = sphi 0, %s72
    %s92 = sphi 0, %s92
    %s94 = sphi 0, %s92
    %s95 = sphi 0, %s94
    %s109 = sphi 0, %s95
    %s113 = sphi 0, %s113
    %s115 = sphi 0, %s113
    %s116 = sphi 0, %s115
    %s130 = sphi 0, %s116
    %s138 = sphi 0, %s140
    %s141 = sphi 0, %s138
    %s142 = sphi 0, %s141
    %s158 = sphi 0, %s142
  $region4: #{tpu_custom_call.1} parent=0 // loop_header_branch
    %13 = sbr.rel (%p11) target = $region8
  $region5: #{tpu_custom_call.1} parent=0 // loop_body
    %s15 = ssub.s32 %s10, 1
    %s16 = ssub.s32 %s10, 2
    %s23 = sadd.s32 1, %s18
    %p24 = scmp.ge.s32.totalorder %s23, 1
    %s25 = scalar_select %p24, 0, %s23
    %s26 = sadd.s32 1, %s17
    %s27 = scalar_select %p24, %s26, %s17
    %p28 = scmp.ge.s32.totalorder %s27, 2
    %s29 = scalar_select %p28, 0, %s27
    %s30 = ssub.s32 %s17, %s29
    %s31 = ssub.s32 %s18, %s25
    %s32 = sor.u32 %s30, %s31
    %p33 = scmp.eq.s32.totalorder %s32, 0
    %s35 = sadd.s32 %s34, 1
    %s36 = scalar_select %p33, %s34, %s35
    %p39 = pneg %p33
    %p40 = scmp.eq.s32.totalorder %s10, 1
    %p41 = por %p39, %p40
    %p42 = scmp.ne.s32.totalorder %s34, %s37
    %p43 = scmp.eq.s32.totalorder %s10, 0
    %p44 = por %p42, %p43
    %p45 = scmp.ne.s32.totalorder %s34, %s37
    %p46 = scmp.eq.s32.totalorder %s15, 1
    %p47 = por %p45, %p46
    %p48 = scmp.ne.s32.totalorder %s37, %s38
    %p49 = scmp.eq.s32.totalorder %s15, 0
    %p50 = por %p48, %p49
    %p51 = scmp.ne.s32.totalorder %s37, %s38
    %p52 = scmp.eq.s32.totalorder %s16, 1
    %p53 = por %p51, %p52
    %p55 = scmp.ne.s32.totalorder %s38, %s54
    %p56 = scmp.eq.s32.totalorder %s16, 0
    %p57 = por %p55, %p56
    %s58 = sadd.s32 %s18, 1
    %p59 = scmp.lt.s32.totalorder %s58, 0
    %s60 = scalar_select %p59, %s58, 0
    %s61 = sadd.s32 %s25, 1
    %p62 = scmp.lt.s32.totalorder %s61, 0
    %s63 = scalar_select %p62, %s61, 0
    %s64 = ssub.s32 %s17, %s29
    %s65 = ssub.s32 %s60, %s63
    %s66 = sor.u32 %s64, %s65
    %p67 = scmp.eq.s32.totalorder %s66, 0
    %s69 = sadd.s32 %s68, 1
    %s70 = scalar_select %p67, %s68, %s69
    %p73 = pneg %p67
    %p74 = scmp.eq.s32.totalorder %s10, 1
    %p75 = por %p73, %p74
    %p76 = scmp.ne.s32.totalorder %s68, %s71
    %p77 = scmp.eq.s32.totalorder %s10, 0
    %p78 = por %p76, %p77
    %p79 = scmp.ne.s32.totalorder %s68, %s71
    %p80 = scmp.eq.s32.totalorder %s15, 1
    %p81 = por %p79, %p80
    %p82 = scmp.ne.s32.totalorder %s71, %s72
    %p83 = scmp.eq.s32.totalorder %s15, 0
    %p84 = por %p82, %p83
    %p85 = scmp.ne.s32.totalorder %s71, %s72
    %p86 = scmp.eq.s32.totalorder %s16, 1
    %p87 = por %p85, %p86
    %p89 = scmp.ne.s32.totalorder %s72, %s88
    %p90 = scmp.eq.s32.totalorder %s16, 0
    %p91 = por %p89, %p90
    %s93 = sadd.s32 %s92, 1
    %p96 = scmp.eq.s32.totalorder %s10, 1
    %p97 = scmp.ne.s32.totalorder %s92, %s94
    %p98 = scmp.eq.s32.totalorder %s10, 0
    %p99 = por %p97, %p98
    %p100 = scmp.ne.s32.totalorder %s92, %s94
    %p101 = scmp.eq.s32.totalorder %s15, 1
    %p102 = por %p100, %p101
    %p103 = scmp.ne.s32.totalorder %s94, %s95
    %p104 = scmp.eq.s32.totalorder %s15, 0
    %p105 = por %p103, %p104
    %p106 = scmp.ne.s32.totalorder %s94, %s95
    %p107 = scmp.eq.s32.totalorder %s16, 1
    %p108 = por %p106, %p107
    %p110 = scmp.ne.s32.totalorder %s95, %s109
    %p111 = scmp.eq.s32.totalorder %s16, 0
    %p112 = por %p110, %p111
    %s114 = sadd.s32 %s113, 1
    %p117 = scmp.eq.s32.totalorder %s10, 1
    %p118 = scmp.ne.s32.totalorder %s113, %s115
    %p119 = scmp.eq.s32.totalorder %s10, 0
    %p120 = por %p118, %p119
    %p121 = scmp.ne.s32.totalorder %s113, %s115
    %p122 = scmp.eq.s32.totalorder %s15, 1
    %p123 = por %p121, %p122
    %p124 = scmp.ne.s32.totalorder %s115, %s116
    %p125 = scmp.eq.s32.totalorder %s15, 0
    %p126 = por %p124, %p125
    %p127 = scmp.ne.s32.totalorder %s115, %s116
    %p128 = scmp.eq.s32.totalorder %s16, 1
    %p129 = por %p127, %p128
    %p131 = scmp.ne.s32.totalorder %s116, %s130
    %p132 = scmp.eq.s32.totalorder %s16, 0
    %p133 = por %p131, %p132
    %s134 = ssub.s32 %s17, %s29
    %s135 = ssub.s32 %s18, %s25
    %s136 = sor.u32 %s134, %s135
    %p137 = scmp.eq.s32.totalorder %s136, 0
    %s139 = sadd.s32 %s138, 1
    %s140 = scalar_select %p137, %s138, %s139
    %p143 = pneg %p137
    %p144 = scmp.eq.s32.totalorder %s10, 1
    %p145 = por %p143, %p144
    %p146 = scmp.ne.s32.totalorder %s138, %s141
    %p147 = scmp.eq.s32.totalorder %s10, 0
    %p148 = por %p146, %p147
    %p149 = scmp.ne.s32.totalorder %s138, %s141
    %p150 = scmp.eq.s32.totalorder %s15, 1
    %p151 = por %p149, %p150
    %p152 = scmp.ne.s32.totalorder %s141, %s142
    %p153 = scmp.eq.s32.totalorder %s15, 0
    %p154 = por %p152, %p153
    %p155 = scmp.ne.s32.totalorder %s141, %s142
    %p156 = scmp.eq.s32.totalorder %s16, 1
    %p157 = por %p155, %p156
    %p159 = scmp.ne.s32.totalorder %s142, %s158
    %p160 = scmp.eq.s32.totalorder %s16, 0
    %p161 = por %p159, %p160
    %p162 = scmp.le.s32.totalorder 1, %s10
    %p163 = scmp.lt.s32.totalorder %s10, 3
    %p164 = pnand %p162, %p163
    %p165 = pneg %p164
    // Predicated region
    $region9: #{tpu_custom_call.1} parent=5 // pred_check
      _
    $region10: #{tpu_custom_call.1} parent=5 // pred_check_branch
      %167 = sbr.rel (%p164) target = $region12
    $region11: #{tpu_custom_call.1} parent=5 // pred_region
      %s168 = ssub.s32 %s10, 1
      // Predicated region
      $region13: #{tpu_custom_call.1} parent=11 // pred_check
        %p169 = pneg %p105
      $region14: #{tpu_custom_call.1} parent=11 // pred_check_branch
        %171 = sbr.rel (%p169) target = $region16
      $region15: #{tpu_custom_call.1} parent=11 // pred_region
        _
      $region16: #{tpu_custom_call.1} parent=11 // pred_fallthru
        _
      // Predicated region
      $region17: #{tpu_custom_call.1} parent=11 // pred_check
        %p172 = pneg %p126
      $region18: #{tpu_custom_call.1} parent=11 // pred_check_branch
        %174 = sbr.rel (%p172) target = $region20
      $region19: #{tpu_custom_call.1} parent=11 // pred_region
        _
      $region20: #{tpu_custom_call.1} parent=11 // pred_fallthru
        _
    $region12: #{tpu_custom_call.1} parent=5 // pred_fallthru
      _
    %p175 = scmp.lt.s32.totalorder %s10, 2
    // Predicated region
    $region21: #{tpu_custom_call.1} parent=5 // pred_check
      %p176 = pneg %p175
    $region22: #{tpu_custom_call.1} parent=5 // pred_check_branch
      %178 = sbr.rel (%p176) target = $region24
    $region23: #{tpu_custom_call.1} parent=5 // pred_region
      // Predicated region
      $region25: #{tpu_custom_call.1} parent=23 // pred_check
        %p179 = pneg %p44
      $region26: #{tpu_custom_call.1} parent=23 // pred_check_branch
        %181 = sbr.rel (%p179) target = $region28
      $region27: #{tpu_custom_call.1} parent=23 // pred_region
        %s182 = smul.u32 2, %s18
        %p183 = scmp.lt.s32.totalorder %s17, 1
        %s184 = scalar_select %p183, %s17, 1
        %p185 = scmp.lt.s32.totalorder %s182, 1
        %s186 = scalar_select %p185, %s182, 1
        %s187 = smul.addr %s184, 2
        %s188 = sadd.s32 %s186, %s187
        %s189 = smul.addr %s188, 8
        %s190 = scalar_lea.vmem %s0, %s189
        %s191 = smul.u32 2, %s18
      $region28: #{tpu_custom_call.1} parent=23 // pred_fallthru
        _
      // Predicated region
      $region29: #{tpu_custom_call.1} parent=23 // pred_check
        %p192 = pneg %p78
      $region30: #{tpu_custom_call.1} parent=23 // pred_check_branch
        %194 = sbr.rel (%p192) target = $region32
      $region31: #{tpu_custom_call.1} parent=23 // pred_region
        %s195 = sadd.s32 %s18, 1
        %p196 = scmp.lt.s32.totalorder %s195, 0
        %s197 = scalar_select %p196, %s195, 0
        %s198 = smul.u32 2, %s197
        %p199 = scmp.lt.s32.totalorder %s17, 1
        %s200 = scalar_select %p199, %s17, 1
        %p201 = scmp.lt.s32.totalorder %s198, 1
        %s202 = scalar_select %p201, %s198, 1
        %s203 = smul.addr %s200, 2
        %s204 = sadd.s32 %s202, %s203
        %s205 = smul.addr %s204, 8
        %s206 = scalar_lea.vmem %s1, %s205
        %s207 = sadd.s32 %s18, 1
        %p208 = scmp.lt.s32.totalorder %s207, 0
        %s209 = scalar_select %p208, %s207, 0
        %s210 = smul.u32 2, %s209
      $region32: #{tpu_custom_call.1} parent=23 // pred_fallthru
        _
    $region24: #{tpu_custom_call.1} parent=5 // pred_fallthru
      _
    %p211 = scmp.le.s32.totalorder 1, %s10
    %p212 = scmp.lt.s32.totalorder %s10, 3
    %p213 = pnand %p211, %p212
    %p214 = pneg %p213
    // Predicated region
    $region33: #{tpu_custom_call.1} parent=5 // pred_check
      _
    $region34: #{tpu_custom_call.1} parent=5 // pred_check_branch
      %216 = sbr.rel (%p213) target = $region36
    $region35: #{tpu_custom_call.1} parent=5 // pred_region
      %s217 = ssub.s32 %s10, 1
      %s218 = smul.u32 2, %s20
      %p219 = scmp.lt.s32.totalorder %s19, 1
      %s220 = scalar_select %p219, %s19, 1
      %p221 = scmp.lt.s32.totalorder %s218, 1
      %s222 = scalar_select %p221, %s218, 1
      %s223 = smul.addr %s220, 2
      %s224 = sadd.s32 %s222, %s223
      %s225 = smul.addr %s224, 8
      %s226 = scalar_lea.vmem %s0, %s225
      %p227 = pneg %p50
      %p228 = pneg %p47
      %s229 = sadd.s32 %s20, 1
      %p230 = scmp.lt.s32.totalorder %s229, 0
      %s231 = scalar_select %p230, %s229, 0
      %s232 = smul.u32 2, %s231
      %p233 = scmp.lt.s32.totalorder %s19, 1
      %s234 = scalar_select %p233, %s19, 1
      %p235 = scmp.lt.s32.totalorder %s232, 1
      %s236 = scalar_select %p235, %s232, 1
      %s237 = smul.addr %s234, 2
      %s238 = sadd.s32 %s236, %s237
      %s239 = smul.addr %s238, 8
      %s240 = scalar_lea.vmem %s1, %s239
      %p241 = pneg %p84
      %p242 = pneg %p81
      %p243 = pneg %p105
      %p244 = pneg %p102
      %p245 = pneg %p126
      %p246 = pneg %p123
      %p247 = pneg %p154
      %p248 = pneg %p151
      %s249 = smul.u32 2, %s20
      %p250 = scmp.lt.s32.totalorder %s19, 1
      %s251 = scalar_select %p250, %s19, 1
      %p252 = scmp.lt.s32.totalorder %s249, 1
      %s253 = scalar_select %p252, %s249, 1
      %s254 = smul.addr %s251, 2
      %s255 = sadd.s32 %s253, %s254
      %s256 = smul.addr %s255, 8
      %s257 = scalar_lea.vmem %s4, %s256
      %s258 = smul.u32 2, %s20
      %p259 = scmp.lt.s32.totalorder %s19, 1
      %s260 = scalar_select %p259, %s19, 1
      %p261 = scmp.lt.s32.totalorder %s258, 1
      %s262 = scalar_select %p261, %s258, 1
      %s263 = smul.addr %s260, 2
      %s264 = sadd.s32 %s262, %s263
      %s265 = smul.addr %s264, 8
      %s266 = scalar_lea.vmem %s0, %s265
      %s267 = smul.u32 2, %s20
      %s268 = sadd.s32 %s20, 1
      %p269 = scmp.lt.s32.totalorder %s268, 0
      %s270 = scalar_select %p269, %s268, 0
      %s271 = smul.u32 2, %s270
      %p272 = scmp.lt.s32.totalorder %s19, 1
      %s273 = scalar_select %p272, %s19, 1
      %p274 = scmp.lt.s32.totalorder %s271, 1
      %s275 = scalar_select %p274, %s271, 1
      %s276 = smul.addr %s273, 2
      %s277 = sadd.s32 %s275, %s276
      %s278 = smul.addr %s277, 8
      %s279 = scalar_lea.vmem %s1, %s278
      %s280 = sadd.s32 %s20, 1
      %p281 = scmp.lt.s32.totalorder %s280, 0
      %s282 = scalar_select %p281, %s280, 0
      %s283 = smul.u32 2, %s282
      %s284 = smul.u32 2, %s20
      %p285 = scmp.lt.s32.totalorder %s19, 1
      %s286 = scalar_select %p285, %s19, 1
      %p287 = scmp.lt.s32.totalorder %s284, 1
      %s288 = scalar_select %p287, %s284, 1
      %s289 = smul.addr %s286, 2
      %s290 = sadd.s32 %s288, %s289
      %s291 = smul.addr %s290, 8
      %s292 = scalar_lea.vmem %s4, %s291
      %s293 = smul.u32 2, %s20
      %v294 = vld [vmem:[%s266] sm:$0xff]
      %v295 = vld [vmem:[%s266 + $0x8] sm:$0xff]
      %v296 = vld [vmem:[%s2] sm:$0xf]
      %vm297 = vcmask 31744
      %v299 = vsel %vm297, %v294, 0
      %v302 = vsel %vm297, %v295, 0
      %vm304 = vcmask 1043456
      %v306 = vsel %vm304, %v296, 0
      %308 = vmatpush.msra.mxu0 0.0
      %309 = vmatpush.msra.mxu0 0.0
      %310 = vmatpush.msra.mxu0 0.0
      %311 = vmatpush.msra.mxu0 0.0
      %312 = vmatpush.msra.mxu0 0.0
      %313 = vmatpush.msra.mxu0 0.0
      %314 = vmatpush.msra.mxu0 0.0
      %315 = vmatpush.msra.mxu0 0.0
      %316 = vmatpush.msra.mxu0 0.0
      %317 = vmatpush.msra.mxu0 0.0
      %318 = vmatpush.msra.mxu0 0.0
      %319 = vmatpush.msra.mxu0 0.0
      %320 = vmatpush.msra.mxu0 0.0
      %321 = vmatpush.msra.mxu0 0.0
      %322 = vmatpush.msra.mxu0 0.0
      %323 = vmatpush.msra.mxu0 %v306
      %324 = vmatmul.f32.gmra.mxu0 %v299
      %v325 = vpop.f32.mrf.mxu0
      %v326 = vadd.f32 0.0, %v325
      %327 = vmatmul.f32.gmra.mxu0 %v302
      %v328 = vpop.f32.mrf.mxu0
      %v329 = vadd.f32 0.0, %v328
      %330 = vdwg.mxu0
      %vm331 = vcmask 195584
      %332 = vst.msk [vmem:[#allocation2] sm:$0xff] %vm331, %v326
      %333 = vst.msk [vmem:[#allocation2 + $0x8] sm:$0xff] %vm331, %v329
      %v334 = vld [vmem:[%s279] sm:$0xff]
      %v335 = vld [vmem:[%s279 + $0x8] sm:$0xff]
      %v336 = vld [vmem:[%s2] sm:$0xf]
      %v338 = vsel %vm297, %v334, 0
      %v341 = vsel %vm297, %v335, 0
      %v344 = vsel %vm304, %v336, 0
      %346 = vmatpush.msra.mxu0 0.0
      %347 = vmatpush.msra.mxu0 0.0
      %348 = vmatpush.msra.mxu0 0.0
      %349 = vmatpush.msra.mxu0 0.0
      %350 = vmatpush.msra.mxu0 0.0
      %351 = vmatpush.msra.mxu0 0.0
      %352 = vmatpush.msra.mxu0 0.0
      %353 = vmatpush.msra.mxu0 0.0
      %354 = vmatpush.msra.mxu0 0.0
      %355 = vmatpush.msra.mxu0 0.0
      %356 = vmatpush.msra.mxu0 0.0
      %357 = vmatpush.msra.mxu0 0.0
      %358 = vmatpush.msra.mxu0 0.0
      %359 = vmatpush.msra.mxu0 0.0
      %360 = vmatpush.msra.mxu0 0.0
      %361 = vmatpush.msra.mxu0 %v344
      %362 = vmatmul.f32.gmra.mxu0 %v338
      %v363 = vpop.f32.mrf.mxu0
      %v364 = vadd.f32 0.0, %v363
      %365 = vmatmul.f32.gmra.mxu0 %v341
      %v366 = vpop.f32.mrf.mxu0
      %v367 = vadd.f32 0.0, %v366
      %368 = vdwg.mxu0
      %369 = vst.msk [vmem:[#allocation2 + $0x10] sm:$0xff] %vm331, %v364
      %370 = vst.msk [vmem:[#allocation2 + $0x18] sm:$0xff] %vm331, %v367
      %v371 = vld [vmem:[#allocation2] sm:$0xff]
      %v372 = vld [vmem:[#allocation2 + $0x8] sm:$0xff]
      %v373 = vld [vmem:[#allocation2 + $0x10] sm:$0xff]
      %vm377 = vcmask 1044480
      %v378 = vrot.slane %v371, 3
      %v379 = vrot.slane %v372, 3
      %v380 = vsel %vm377, %v378, %v379
      %v381 = vrot.slane %v373, 3
      %v382 = vsel %vm377, %v379, %v381
      %383 = vrot.lane.b32.xlu0 %v380, 120
      %v384 = vpop.permute.xlu0 %383
      %385 = vrot.lane.b32.xlu0 %v382, 120
      %v386 = vpop.permute.xlu0 %385
      %v389 = vadd.f32 %v371, %v384
      %v390 = vadd.f32 %v372, %v386
      %vm391 = vcmask 1041408
      %v392 = vrot.slane %v371, 6
      %v393 = vrot.slane %v372, 6
      %v394 = vsel %vm391, %v392, %v393
      %v395 = vrot.slane %v373, 6
      %v396 = vsel %vm391, %v393, %v395
      %397 = vrot.lane.b32.xlu0 %v394, 112
      %v398 = vpop.permute.xlu0 %397
      %399 = vrot.lane.b32.xlu0 %v396, 112
      %v400 = vpop.permute.xlu0 %399
      %v403 = vadd.f32 %v389, %v398
      %v404 = vadd.f32 %v390, %v400
      %v405 = vld [vmem:[%s3] sm:$0x1]
      %v407 = vperm.slane %v405, 0
      %v409 = vadd.f32 %v403, %v407
      %v410 = vadd.f32 %v404, %v407
      %v411 = vmax.f32 %v409, 0.0
      %v412 = vmax.f32 %v410, 0.0
      %p413 = scmp.lt.s32.totalorder %s20, 0
      // Predicated region
      $region37: #{tpu_custom_call.1} parent=35 // pred_check
        %p414 = pneg %p413
      $region38: #{tpu_custom_call.1} parent=35 // pred_check_branch
        %416 = sbr.rel (%p414) target = $region40
      $region39: #{tpu_custom_call.1} parent=35 // pred_region
        %vm417 = vcmask 64512
        %418 = vst.msk [vmem:[%s292] sm:$0xff] %vm417, %v411
        %419 = vst.msk [vmem:[%s292 + $0x8] sm:$0xff] %vm417, %v412
      $region40: #{tpu_custom_call.1} parent=35 // pred_fallthru
        _
      %p420 = scmp.ge.s32.totalorder %s20, 0
      // Predicated region
      $region41: #{tpu_custom_call.1} parent=35 // pred_check
        %p421 = pneg %p420
      $region42: #{tpu_custom_call.1} parent=35 // pred_check_branch
        %423 = sbr.rel (%p421) target = $region44
      $region43: #{tpu_custom_call.1} parent=35 // pred_region
        %s424 = smul.u32 %s20, 16
        %v425 = vlaneseq
        %v426 = vshrl.u32 %v425, 7
        %v427 = vadd.s32 %v426, 8
        %v428 = vstv %s424
        %v429 = vadd.s32 %v428, %v426
        %v430 = vadd.s32 %v428, %v427
        %vm431 = vcmp.lt.s32.totalorder %v429, 10
        %vm432 = vcmp.lt.s32.totalorder %v430, 10
        %v433 = vsel %vm431, %v411, 0.0
        %v434 = vsel %vm432, %v412, 0.0
        %vm435 = vcmask 64512
        %436 = vst.msk [vmem:[%s292] sm:$0xff] %vm435, %v433
        %437 = vst.msk [vmem:[%s292 + $0x8] sm:$0xff] %vm435, %v434
      $region44: #{tpu_custom_call.1} parent=35 // pred_fallthru
        _
      %s438 = smul.u32 2, %s20
      %p439 = scmp.lt.s32.totalorder %s19, 1
      %s440 = scalar_select %p439, %s19, 1
      %p441 = scmp.lt.s32.totalorder %s438, 1
      %s442 = scalar_select %p441, %s438, 1
      %s443 = smul.addr %s440, 2
      %s444 = sadd.s32 %s442, %s443
      %s445 = smul.addr %s444, 8
      %s446 = scalar_lea.vmem %s4, %s445
      // Predicated region
      $region45: #{tpu_custom_call.1} parent=35 // pred_check
        %p447 = pneg %p151
      $region46: #{tpu_custom_call.1} parent=35 // pred_check_branch
        %449 = sbr.rel (%p447) target = $region48
      $region47: #{tpu_custom_call.1} parent=35 // pred_region
        %s450 = smul.u32 2, %s20
      $region48: #{tpu_custom_call.1} parent=35 // pred_fallthru
        _
    $region36: #{tpu_custom_call.1} parent=5 // pred_fallthru
      _
    %p451 = scmp.le.s32.totalorder 2, %s10
    // Predicated region
    $region49: #{tpu_custom_call.1} parent=5 // pred_check
      %p452 = pneg %p451
    $region50: #{tpu_custom_call.1} parent=5 // pred_check_branch
      %454 = sbr.rel (%p452) target = $region52
    $region51: #{tpu_custom_call.1} parent=5 // pred_region
      %s455 = ssub.s32 %s10, 2
      // Predicated region
      $region53: #{tpu_custom_call.1} parent=51 // pred_check
        %p456 = pneg %p157
      $region54: #{tpu_custom_call.1} parent=51 // pred_check_branch
        %458 = sbr.rel (%p456) target = $region56
      $region55: #{tpu_custom_call.1} parent=51 // pred_region
        %s459 = smul.u32 2, %s22
        %p460 = scmp.lt.s32.totalorder %s21, 1
        %s461 = scalar_select %p460, %s21, 1
        %p462 = scmp.lt.s32.totalorder %s459, 1
        %s463 = scalar_select %p462, %s459, 1
        %s464 = smul.addr %s461, 2
        %s465 = sadd.s32 %s463, %s464
        %s466 = smul.addr %s465, 8
        %s467 = scalar_lea.vmem %s4, %s466
      $region56: #{tpu_custom_call.1} parent=51 // pred_fallthru
        _
    $region52: #{tpu_custom_call.1} parent=5 // pred_fallthru
      _
  $region6: #{tpu_custom_call.1} parent=0 // loop_footer
    %s14 = sadd.s32 1, %s10
  $region7: #{tpu_custom_call.1} parent=0 // loop_footer_branch
    %9 = sbr.rel target = $region3
  $region8: #{tpu_custom_call.1} parent=0 // loop_exit
    _

</llo_original>
